<compile_context>
chip_gen: v6e
topology: v6e:2x2x1
jax: 0.10.0
libtpu: 0.0.40
codegen_flags: <defaults>
</compile_context>

<pallas_src>
import jax
import jax.numpy as jnp
import numpy as np
from jax.experimental import pallas as pl
from jax.experimental.pallas import tpu as pltpu


# ----------------------------------------------------------------------------
# Prologue kernel (runs once, tiny): surrogate conditioning path + CFG combine
# of the per-(batch, channel) terms.
#   scale[b, c] = 1 + 0.1 * t[b]
#   bias_pos[b] = mean_s(ctx_cond[b])   @ Wctx + y_cond[b]   @ Wy
#   bias_neg[b] = mean_s(ctx_uncond[b]) @ Wctx + y_uncond[b] @ Wy
#   bias_cfg    = bias_neg + (bias_pos - bias_neg) * cond_scale
# By linearity the CFG combine is applied to the pooled features *before* the
# projection, halving the number of (tiny) dots.
# ----------------------------------------------------------------------------
def _cond_bias_kernel(t_ref, ctx_c_ref, ctx_u_ref, y_c_ref, y_u_ref,
                      wctx_ref, wy_ref, s_ref, scale_out, bias_out):
    s = s_ref[0]                                       # cond_scale (SMEM scalar)
    mean_c = jnp.mean(ctx_c_ref[...], axis=1)          # (B, D) sublane reduce
    mean_u = jnp.mean(ctx_u_ref[...], axis=1)          # (B, D)
    mean_cfg = mean_u + (mean_c - mean_u) * s
    y_cfg = y_u_ref[...] + (y_c_ref[...] - y_u_ref[...]) * s
    # Tiny one-shot projection; dot overhead is negligible since this kernel
    # runs once (it is no longer recomputed per spatial tile).
    bias_out[...] = (
        jnp.dot(mean_cfg, wctx_ref[...], preferred_element_type=jnp.float32)
        + jnp.dot(y_cfg, wy_ref[...], preferred_element_type=jnp.float32))
    scale_out[...] = jnp.broadcast_to(1.0 + 0.1 * t_ref[...], scale_out.shape)


def _cond_bias_pallas(t_b1, ctx_c, ctx_u, y_c, y_u, wctx, wy, cond_scale):
    b = t_b1.shape[0]
    c = wctx.shape[1]
    vmem = pl.BlockSpec(memory_space=pltpu.MemorySpace.VMEM)
    smem = pl.BlockSpec(memory_space=pltpu.MemorySpace.SMEM)
    scale_arr = jnp.asarray([cond_scale], dtype=jnp.float32)
    return pl.pallas_call(
        _cond_bias_kernel,
        out_shape=(jax.ShapeDtypeStruct((b, c), jnp.float32),   # scale[b, c]
                   jax.ShapeDtypeStruct((b, c), jnp.float32)),  # bias_cfg[b, c]
        in_specs=[vmem, vmem, vmem, vmem, vmem, vmem, vmem, smem],
        out_specs=(vmem, vmem),
    )(t_b1, ctx_c, ctx_u, y_c, y_u, wctx, wy, scale_arr)


# ----------------------------------------------------------------------------
# Fused hot-path kernel:  out[r, :] = x[r, :] * scale[r] + bias_cfg[r]
# x is presented as (B*C, H*W) so H*W maps to the lane axis (lane-dense,
# unmasked stores for tiles that are multiples of 128).
# ----------------------------------------------------------------------------
def _cfg_apply_kernel(x_ref, scale_ref, bias_ref, out_ref):
    x = x_ref[...].astype(jnp.float32)
    out_ref[...] = (x * scale_ref[...] + bias_ref[...]).astype(out_ref.dtype)


def _pick_tile(dim, unit, max_tile):
    """Largest multiple of `unit` dividing `dim` and <= max_tile, else full dim."""
    if dim <= max_tile:
        return dim
    t = (max_tile // unit) * unit
    while t >= unit:
        if dim % t == 0:
            return t
        t -= unit
    return dim


def _cfg_apply_pallas(x2d, scale_col, bias_col):
    rows, hw = x2d.shape
    tr = _pick_tile(rows, 8, 256)       # sublane tile
    thw = _pick_tile(hw, 128, 2048)     # lane tile (<= 2 MiB f32 per block)
    grid = (rows // tr, hw // thw)
    return pl.pallas_call(
        _cfg_apply_kernel,
        out_shape=jax.ShapeDtypeStruct((rows, hw), x2d.dtype),
        grid=grid,
        in_specs=[
            pl.BlockSpec((tr, thw), lambda i, j: (i, j)),
            pl.BlockSpec((tr, 1), lambda i, j: (i, 0)),   # per-row scale
            pl.BlockSpec((tr, 1), lambda i, j: (i, 0)),   # per-row cfg bias
        ],
        out_specs=pl.BlockSpec((tr, thw), lambda i, j: (i, j)),
        compiler_params=pltpu.CompilerParams(
            dimension_semantics=("parallel", "parallel")),
    )(x2d, scale_col, bias_col)


# ----------------------------------------------------------------------------
# CFGDenoiser.forward equivalent
# ----------------------------------------------------------------------------
def cfg_denoiser_forward(x, timestep, cond, uncond, cond_scale, wctx, wy,
                         debug=False):
    # TODO(synk): `debug` is forwarded to the real model in PyTorch; no-op here.
    b, c, h, w = x.shape
    hw = h * w

    t_b1 = jnp.asarray(timestep, dtype=jnp.float32).reshape(b, 1)
    scale_bc, bias_bc = _cond_bias_pallas(
        t_b1,
        cond["c_crossattn"].astype(jnp.float32),
        uncond["c_crossattn"].astype(jnp.float32),
        cond["y"].astype(jnp.float32),
        uncond["y"].astype(jnp.float32),
        wctx.astype(jnp.float32),
        wy.astype(jnp.float32),
        cond_scale)

    # x is read exactly once: the pos/neg halves of torch.cat([x, x]) receive
    # identical x and timestep, so the CFG combine collapses onto the
    # per-(b, c) bias.  Preserve this invariant if the surrogate is replaced
    # by the real MMDiT.
    x2d = x.reshape(b * c, hw)
    out2d = _cfg_apply_pallas(x2d,
                              scale_bc.reshape(b * c, 1),
                              bias_bc.reshape(b * c, 1))
    return out2d.reshape(b, c, h, w)


# ----------------------------------------------------------------------------
# Pure-JAX reference (un-fused, mirrors the PyTorch CFGDenoiser.forward flow)
# ----------------------------------------------------------------------------
def reference_forward(x, timestep, cond, uncond, cond_scale, wctx, wy):
    b = x.shape[0]
    x2 = jnp.concatenate([x, x], axis=0)
    t2 = jnp.concatenate([timestep, timestep], axis=0)
    ctx2 = jnp.concatenate([cond["c_crossattn"], uncond["c_crossattn"]], axis=0)
    y2 = jnp.concatenate([cond["y"], uncond["y"]], axis=0)
    ctx_mean = jnp.mean(ctx2, axis=1)
    bias = ctx_mean @ wctx + y2 @ wy
    out = x2 * (1.0 + 0.1 * t2)[:, None, None, None] + bias[:, :, None, None]
    pos, neg = out[:b], out[b:]
    return neg + (pos - neg) * cond_scale


if __name__ == "__main__":
    B, C, H, W = 2, 4, 16, 16      # latent x: NCHW
    S, D = 8, 32                   # cross-attn context: (B, S, D); y: (B, D)

    key = jax.random.PRNGKey(0)
    k_x, k_c, k_u, k_yc, k_yu, k_wc, k_wy = jax.random.split(key, 7)

    x = jax.random.normal(k_x, (B, C, H, W), dtype=jnp.float32)
    timestep = jnp.array([0.25, 0.75], dtype=jnp.float32)            # (B,)
    cond = {
        "c_crossattn": jax.random.normal(k_c, (B, S, D), dtype=jnp.float32),
        "y": jax.random.normal(k_yc, (B, D), dtype=jnp.float32),
    }
    uncond = {
        "c_crossattn": jax.random.normal(k_u, (B, S, D), dtype=jnp.float32),
        "y": jax.random.normal(k_yu, (B, D), dtype=jnp.float32),
    }
    cond_scale = 5.0

    # Deterministic surrogate-model parameters (shapes implied by D -> C bias).
    W_CTX = 0.1 * jax.random.normal(k_wc, (D, C), dtype=jnp.float32)
    W_Y = 0.1 * jax.random.normal(k_wy, (D, C), dtype=jnp.float32)

    out = cfg_denoiser_forward(x, timestep, cond, uncond, cond_scale,
                               W_CTX, W_Y, debug=False)
    out = jax.block_until_ready(out)

    ref = reference_forward(x, timestep, cond, uncond, cond_scale, W_CTX, W_Y)
    np.testing.assert_allclose(np.asarray(out), np.asarray(ref),
                               rtol=1e-5, atol=1e-5)
    assert out.shape == (B, C, H, W) and out.dtype == jnp.float32

    print("KERNEL_OK")
</pallas_src>

<mosaic_0001>
module attributes {stable_mosaic.version = 11 : i64} {
  func.func @_cond_bias_kernel(%arg0: memref<2x1xf32, #tpu.memory_space<vmem>>, %arg1: memref<2x8x32xf32, #tpu.memory_space<vmem>>, %arg2: memref<2x8x32xf32, #tpu.memory_space<vmem>>, %arg3: memref<2x32xf32, #tpu.memory_space<vmem>>, %arg4: memref<2x32xf32, #tpu.memory_space<vmem>>, %arg5: memref<32x4xf32, #tpu.memory_space<vmem>>, %arg6: memref<32x4xf32, #tpu.memory_space<vmem>>, %arg7: memref<1xf32, #tpu.memory_space<smem>>, %arg8: memref<2x4xf32, #tpu.memory_space<vmem>>, %arg9: memref<2x4xf32, #tpu.memory_space<vmem>>) attributes {dimension_semantics = [], scalar_prefetch = 0 : i64, scratch_operands = 0 : i64, tpu.core_type = #tpu.core_type<tc>} {
    %c0 = arith.constant 0 : index
    %0 = memref.load %arg7[%c0] : memref<1xf32, #tpu.memory_space<smem>>
    %c0_0 = arith.constant 0 : index
    %c0_1 = arith.constant 0 : index
    %c0_2 = arith.constant 0 : index
    %1 = vector.load %arg1[%c0_0, %c0_1, %c0_2] : memref<2x8x32xf32, #tpu.memory_space<vmem>>, vector<2x8x32xf32>
    %cst = arith.constant dense<0.000000e+00> : vector<2x32xf32>
    %2 = vector.multi_reduction <add>, %1, %cst [1] : vector<2x8x32xf32> to vector<2x32xf32>
    %cst_3 = arith.constant 8.000000e+00 : f32
    %3 = vector.broadcast %cst_3 : f32 to vector<2x32xf32>
    %4 = arith.divf %2, %3 : vector<2x32xf32>
    %c0_4 = arith.constant 0 : index
    %c0_5 = arith.constant 0 : index
    %c0_6 = arith.constant 0 : index
    %5 = vector.load %arg2[%c0_4, %c0_5, %c0_6] : memref<2x8x32xf32, #tpu.memory_space<vmem>>, vector<2x8x32xf32>
    %cst_7 = arith.constant dense<0.000000e+00> : vector<2x32xf32>
    %6 = vector.multi_reduction <add>, %5, %cst_7 [1] : vector<2x8x32xf32> to vector<2x32xf32>
    %cst_8 = arith.constant 8.000000e+00 : f32
    %7 = vector.broadcast %cst_8 : f32 to vector<2x32xf32>
    %8 = arith.divf %6, %7 : vector<2x32xf32>
    %9 = arith.subf %4, %8 : vector<2x32xf32>
    %10 = vector.broadcast %0 : f32 to vector<2x32xf32>
    %11 = arith.mulf %9, %10 : vector<2x32xf32>
    %12 = arith.addf %8, %11 : vector<2x32xf32>
    %c0_9 = arith.constant 0 : index
    %c0_10 = arith.constant 0 : index
    %13 = vector.load %arg4[%c0_9, %c0_10] : memref<2x32xf32, #tpu.memory_space<vmem>>, vector<2x32xf32>
    %c0_11 = arith.constant 0 : index
    %c0_12 = arith.constant 0 : index
    %14 = vector.load %arg3[%c0_11, %c0_12] : memref<2x32xf32, #tpu.memory_space<vmem>>, vector<2x32xf32>
    %c0_13 = arith.constant 0 : index
    %c0_14 = arith.constant 0 : index
    %15 = vector.load %arg4[%c0_13, %c0_14] : memref<2x32xf32, #tpu.memory_space<vmem>>, vector<2x32xf32>
    %16 = arith.subf %14, %15 : vector<2x32xf32>
    %17 = vector.broadcast %0 : f32 to vector<2x32xf32>
    %18 = arith.mulf %16, %17 : vector<2x32xf32>
    %19 = arith.addf %13, %18 : vector<2x32xf32>
    %c0_15 = arith.constant 0 : index
    %c0_16 = arith.constant 0 : index
    %20 = vector.load %arg5[%c0_15, %c0_16] : memref<32x4xf32, #tpu.memory_space<vmem>>, vector<32x4xf32>
    %cst_17 = arith.constant dense<0.000000e+00> : vector<2x4xf32>
    %21 = tpu.matmul %12, %20, %cst_17 {dimension_numbers = #tpu.dot_dimension_numbers<[1], [0], [0], [1], [0, 0, 1, 1], [], []>} : vector<2x32xf32>, vector<32x4xf32>, vector<2x4xf32> -> vector<2x4xf32>
    %c0_18 = arith.constant 0 : index
    %c0_19 = arith.constant 0 : index
    %22 = vector.load %arg6[%c0_18, %c0_19] : memref<32x4xf32, #tpu.memory_space<vmem>>, vector<32x4xf32>
    %cst_20 = arith.constant dense<0.000000e+00> : vector<2x4xf32>
    %23 = tpu.matmul %19, %22, %cst_20 {dimension_numbers = #tpu.dot_dimension_numbers<[1], [0], [0], [1], [0, 0, 1, 1], [], []>} : vector<2x32xf32>, vector<32x4xf32>, vector<2x4xf32> -> vector<2x4xf32>
    %24 = arith.addf %21, %23 : vector<2x4xf32>
    %c0_21 = arith.constant 0 : index
    %c0_22 = arith.constant 0 : index
    %25 = vector.load %arg9[%c0_21, %c0_22] : memref<2x4xf32, #tpu.memory_space<vmem>>, vector<2x4xf32>
    tpu.vector_store %arg9[%c0_21, %c0_22], %24 {strides = array<i32>} : memref<2x4xf32, #tpu.memory_space<vmem>>, vector<2x4xf32>,
    %c0_23 = arith.constant 0 : index
    %c0_24 = arith.constant 0 : index
    %26 = vector.load %arg0[%c0_23, %c0_24] : memref<2x1xf32, #tpu.memory_space<vmem>>, vector<2x1xf32>
    %cst_25 = arith.constant 1.000000e-01 : f32
    %27 = vector.broadcast %cst_25 : f32 to vector<2x1xf32>
    %28 = arith.mulf %27, %26 : vector<2x1xf32>
    %cst_26 = arith.constant 1.000000e+00 : f32
    %29 = vector.broadcast %cst_26 : f32 to vector<2x1xf32>
    %30 = arith.addf %29, %28 : vector<2x1xf32>
    %31 = vector.shape_cast %30 : vector<2x1xf32> to vector<2x1xf32>
    %32 = vector.broadcast %31 : vector<2x1xf32> to vector<2x4xf32>
    %c0_27 = arith.constant 0 : index
    %c0_28 = arith.constant 0 : index
    %33 = vector.load %arg8[%c0_27, %c0_28] : memref<2x4xf32, #tpu.memory_space<vmem>>, vector<2x4xf32>
    tpu.vector_store %arg8[%c0_27, %c0_28], %32 {strides = array<i32>} : memref<2x4xf32, #tpu.memory_space<vmem>>, vector<2x4xf32>,
    return
  }
}

</mosaic_0001>

<llo_original>
// kernel: tpu_custom_call.1
$region0: #{tpu_custom_call.1}
  #allocation0 [shape = 'u32[]', space=smem, size = 0x4, offset = 0x4, fixed_abs, tag = 'smem constant byte address 0x4 - core index']
  #allocation1 [shape = 'u32[144,128]{1,0:T(1,128)}', space=vmem, size = 0x12000, scoped, tag = 'internal scratch']
  #allocation2 [shape = 'f32[1]{0:T(128)S(6)}', space=smem, size = 0x200, scoped, tag = 'scoped memory for tpu_custom_call.1']
  %s0 = inlined_call_operand.vmem [shape: f32[2,1], index: 0, kind: input, shape index: {}]
  %s1 = inlined_call_operand.vmem [shape: f32[2,8,32], index: 1, kind: input, shape index: {}]
  %s2 = inlined_call_operand.vmem [shape: f32[2,8,32], index: 2, kind: input, shape index: {}]
  %s3 = inlined_call_operand.vmem [shape: f32[2,32], index: 3, kind: input, shape index: {}]
  %s4 = inlined_call_operand.vmem [shape: f32[2,32], index: 4, kind: input, shape index: {}]
  %s5 = inlined_call_operand.vmem [shape: f32[32,4], index: 5, kind: input, shape index: {}]
  %s6 = inlined_call_operand.vmem [shape: f32[32,4], index: 6, kind: input, shape index: {}]
  %s7 = inlined_call_operand.<no memory space> [shape: f32[1], index: 7, kind: input, shape index: {}]
  %s8 = inlined_call_operand.hbm [shape: f32[2,4], index: 8, kind: output, shape index: {0}]
  %s9 = inlined_call_operand.hbm [shape: f32[2,4], index: 9, kind: output, shape index: {1}]
  %10 = xla_tuple %s8, %s9
  %s11 = sld [smem:[#allocation0]]
  $region50: #{tpu_custom_call.1} parent=0
    _
  %s13 = ssub.s32 1, %s11
  %s14 = scalar_select 0, %s13, %s11
  %15 = sst [smem:[#allocation2]] %s7
  $region1: #{tpu_custom_call.1} parent=0
    #allocation3 [shape = 'u8[1024]{0}', space=vmem, size = 0x400, scoped, tag = 'output window, operand 0, single buffered']
    #allocation4 [shape = 's32[1]{0}', space=sflag, size = 0x4, scoped, tag = 'scoped memory for tpu_custom_call.1']
    #allocation5 [shape = 'u8[1024]{0}', space=vmem, size = 0x400, scoped, tag = 'output window, operand 1, single buffered']
    #allocation6 [shape = 's32[1]{0}', space=sflag, size = 0x4, scoped, tag = 'scoped memory for tpu_custom_call.1']
    %16 = vsyncpa [#allocation4], 0
    %17 = vsyncpa [#allocation6], 0
    // Predicated region
    $region2: #{tpu_custom_call.1} parent=1 // pred_check
      _
    $region3: #{tpu_custom_call.1} parent=1 // pred_check_branch
      %19 = sbr.rel (0) target = $region5
    $region4: #{tpu_custom_call.1} parent=1 // pred_region
      _
    $region5: #{tpu_custom_call.1} parent=1 // pred_fallthru
      _
    // Predicated region
    $region6: #{tpu_custom_call.1} parent=1 // pred_check
      _
    $region7: #{tpu_custom_call.1} parent=1 // pred_check_branch
      %21 = sbr.rel (0) target = $region9
    $region8: #{tpu_custom_call.1} parent=1 // pred_region
      _
    $region9: #{tpu_custom_call.1} parent=1 // pred_fallthru
      _
    // Predicated region
    $region10: #{tpu_custom_call.1} parent=1 // pred_check
      _
    $region11: #{tpu_custom_call.1} parent=1 // pred_check_branch
      %23 = sbr.rel (0) target = $region13
    $region12: #{tpu_custom_call.1} parent=1 // pred_region
      _
    $region13: #{tpu_custom_call.1} parent=1 // pred_fallthru
      _
    // Predicated region
    $region14: #{tpu_custom_call.1} parent=1 // pred_check
      _
    $region15: #{tpu_custom_call.1} parent=1 // pred_check_branch
      %25 = sbr.rel (0) target = $region17
    $region16: #{tpu_custom_call.1} parent=1 // pred_region
      _
    $region17: #{tpu_custom_call.1} parent=1 // pred_fallthru
      _
    // Predicated region
    $region18: #{tpu_custom_call.1} parent=1 // pred_check
      _
    $region19: #{tpu_custom_call.1} parent=1 // pred_check_branch
      %27 = sbr.rel (0) target = $region21
    $region20: #{tpu_custom_call.1} parent=1 // pred_region
      _
    $region21: #{tpu_custom_call.1} parent=1 // pred_fallthru
      _
    // Predicated region
    $region22: #{tpu_custom_call.1} parent=1 // pred_check
      _
    $region23: #{tpu_custom_call.1} parent=1 // pred_check_branch
      %29 = sbr.rel (0) target = $region25
    $region24: #{tpu_custom_call.1} parent=1 // pred_region
      _
    $region25: #{tpu_custom_call.1} parent=1 // pred_fallthru
      _
    // Predicated region
    $region26: #{tpu_custom_call.1} parent=1 // pred_check
      _
    $region27: #{tpu_custom_call.1} parent=1 // pred_check_branch
      %31 = sbr.rel (0) target = $region29
    $region28: #{tpu_custom_call.1} parent=1 // pred_region
      _
    $region29: #{tpu_custom_call.1} parent=1 // pred_fallthru
      _
    // Predicated region
    $region30: #{tpu_custom_call.1} parent=1 // pred_check
      _
    $region31: #{tpu_custom_call.1} parent=1 // pred_check_branch
      %33 = sbr.rel (0) target = $region33
    $region32: #{tpu_custom_call.1} parent=1 // pred_region
      _
    $region33: #{tpu_custom_call.1} parent=1 // pred_fallthru
      _
    %s34 = sld [smem:[#allocation2]]
    %v35 = vld [vmem:[%s1] sm:$0xff]
    %v36 = vld [vmem:[%s1 + $0x8] sm:$0xff]
    %vm37 = vcmask 261120
    %v38 = vsel %vm37, %v35, 0.0
    %v39 = vrot.slane %v38, 4
    %v40 = vadd.f32 %v38, %v39
    %v41 = vrot.slane %v40, 2
    %v42 = vadd.f32 %v40, %v41
    %v43 = vrot.slane %v42, 1
    %v44 = vadd.f32 %v42, %v43
    %v45 = vsel %vm37, %v36, 0.0
    %v46 = vrot.slane %v45, 4
    %v47 = vadd.f32 %v45, %v46
    %v48 = vrot.slane %v47, 2
    %v49 = vadd.f32 %v47, %v48
    %v50 = vrot.slane %v49, 1
    %v51 = vadd.f32 %v49, %v50
    %v52 = vrcp.pop 8.0
    %v53 = vmul.f32 %v44, %v52
    %v54 = vmul.f32 %v51, %v52
    %v55 = vld [vmem:[%s2] sm:$0xff]
    %v56 = vld [vmem:[%s2 + $0x8] sm:$0xff]
    %v57 = vsel %vm37, %v55, 0.0
    %v58 = vrot.slane %v57, 4
    %v59 = vadd.f32 %v57, %v58
    %v60 = vrot.slane %v59, 2
    %v61 = vadd.f32 %v59, %v60
    %v62 = vrot.slane %v61, 1
    %v63 = vadd.f32 %v61, %v62
    %v64 = vsel %vm37, %v56, 0.0
    %v65 = vrot.slane %v64, 4
    %v66 = vadd.f32 %v64, %v65
    %v67 = vrot.slane %v66, 2
    %v68 = vadd.f32 %v66, %v67
    %v69 = vrot.slane %v68, 1
    %v70 = vadd.f32 %v68, %v69
    %v71 = vmul.f32 %v63, %v52
    %v72 = vmul.f32 %v70, %v52
    %v73 = vsub.f32 %v53, %v71
    %v74 = vsub.f32 %v54, %v72
    %v75 = vstv %s34
    %v76 = vmul.f32 %v73, %v75
    %v77 = vmul.f32 %v74, %v75
    %v78 = vadd.f32 %v71, %v76
    %v79 = vadd.f32 %v72, %v77
    %v80 = vld [vmem:[%s4] sm:$0x3]
    %v81 = vld [vmem:[%s3] sm:$0x3]
    %v82 = vsub.f32 %v81, %v80
    %v83 = vmul.f32 %v82, %v75
    %v84 = vadd.f32 %v80, %v83
    %v85 = vld [vmem:[%s5] sm:$0xff]
    %v86 = vld [vmem:[%s5 + $0x8] sm:$0xff]
    %v87 = vld [vmem:[%s5 + $0x10] sm:$0xff]
    %v88 = vld [vmem:[%s5 + $0x18] sm:$0xff]
    %v89 = vld [vmem:[%s6] sm:$0xff]
    %v90 = vld [vmem:[%s6 + $0x8] sm:$0xff]
    %v91 = vld [vmem:[%s6 + $0x10] sm:$0xff]
    %v92 = vld [vmem:[%s6 + $0x18] sm:$0xff]
    %v94 = vsel %vm37, %v84, 0
    %96 = vmatprep.subr.mxu0 0.0
    %97 = vmatpush1.msra.mxu0 0.0
    %98 = vmatprep.subr.mxu0 0.0
    %99 = vmatpush1.msra.mxu0 0.0
    %100 = vmatprep.subr.mxu0 0.0
    %101 = vmatpush1.msra.mxu0 0.0
    %102 = vmatprep.subr.mxu0 0.0
    %103 = vmatpush1.msra.mxu0 0.0
    %104 = vmatprep.subr.mxu0 0.0
    %105 = vmatpush1.msra.mxu0 0.0
    %106 = vmatprep.subr.mxu0 0.0
    %107 = vmatpush1.msra.mxu0 0.0
    %108 = vmatprep.subr.mxu0 0.0
    %109 = vmatpush1.msra.mxu0 0.0
    %110 = vmatprep.subr.mxu0 0.0
    %111 = vmatpush1.msra.mxu0 0.0
    %112 = vmatprep.subr.mxu0 0.0
    %113 = vmatpush1.msra.mxu0 0.0
    %114 = vmatprep.subr.mxu0 0.0
    %115 = vmatpush1.msra.mxu0 0.0
    %116 = vmatprep.subr.mxu0 0.0
    %117 = vmatpush1.msra.mxu0 0.0
    %118 = vmatprep.subr.mxu0 0.0
    %119 = vmatpush1.msra.mxu0 0.0
    %120 = vmatprep.subr.mxu0 0.0
    %121 = vmatpush1.msra.mxu0 %v92
    %122 = vmatprep.subr.mxu0 0.0
    %123 = vmatpush1.msra.mxu0 %v91
    %124 = vmatprep.subr.mxu0 0.0
    %125 = vmatpush1.msra.mxu0 %v90
    %126 = vmatprep.subr.mxu0 0.0
    %127 = vmatpush1.msra.mxu0 %v89
    %128 = vmatprep.subr.mxu0 0.0
    %129 = vmatpush2.msra.mxu0 0.0
    %130 = vmatprep.subr.mxu0 0.0
    %131 = vmatpush2.msra.mxu0 0.0
    %132 = vmatprep.subr.mxu0 0.0
    %133 = vmatpush2.msra.mxu0 0.0
    %134 = vmatprep.subr.mxu0 0.0
    %135 = vmatpush2.msra.mxu0 0.0
    %136 = vmatprep.subr.mxu0 0.0
    %137 = vmatpush2.msra.mxu0 0.0
    %138 = vmatprep.subr.mxu0 0.0
    %139 = vmatpush2.msra.mxu0 0.0
    %140 = vmatprep.subr.mxu0 0.0
    %141 = vmatpush2.msra.mxu0 0.0
    %142 = vmatprep.subr.mxu0 0.0
    %143 = vmatpush2.msra.mxu0 0.0
    %144 = vmatprep.subr.mxu0 0.0
    %145 = vmatpush2.msra.mxu0 0.0
    %146 = vmatprep.subr.mxu0 0.0
    %147 = vmatpush2.msra.mxu0 0.0
    %148 = vmatprep.subr.mxu0 0.0
    %149 = vmatpush2.msra.mxu0 0.0
    %150 = vmatprep.subr.mxu0 0.0
    %151 = vmatpush2.msra.mxu0 0.0
    %152 = vmatprep.subr.mxu0 0.0
    %153 = vmatpush2.msra.mxu0 0.0
    %154 = vmatprep.subr.mxu0 0.0
    %155 = vmatpush2.msra.mxu0 0.0
    %156 = vmatprep.subr.mxu0 0.0
    %157 = vmatpush2.msra.mxu0 0.0
    %158 = vmatprep.subr.mxu0 0.0
    %159 = vmatpush2.msra.mxu0 0.0
    %160 = vmatprep.mubr.f32.mxu0 0.0
    %161 = vmatmul.mubr.f32.gmra.mxu0 %v94
    %v162 = vpop.f32.mrf.mxu0
    %v163 = vadd.f32 0.0, %v162
    %v164 = vpop.f32.mrf.mxu0
    %165 = vdwg.mxu0
    %vm168 = vcmask 1041409
    %v169 = vsel %vm168, %v79, %v78
    %v170 = vsel %vm37, %v169, 0
    %172 = vmatprep.subr.mxu0 0.0
    %173 = vmatpush1.msra.mxu0 0.0
    %174 = vmatprep.subr.mxu0 0.0
    %175 = vmatpush1.msra.mxu0 0.0
    %176 = vmatprep.subr.mxu0 0.0
    %177 = vmatpush1.msra.mxu0 0.0
    %178 = vmatprep.subr.mxu0 0.0
    %179 = vmatpush1.msra.mxu0 0.0
    %180 = vmatprep.subr.mxu0 0.0
    %181 = vmatpush1.msra.mxu0 0.0
    %182 = vmatprep.subr.mxu0 0.0
    %183 = vmatpush1.msra.mxu0 0.0
    %184 = vmatprep.subr.mxu0 0.0
    %185 = vmatpush1.msra.mxu0 0.0
    %186 = vmatprep.subr.mxu0 0.0
    %187 = vmatpush1.msra.mxu0 0.0
    %188 = vmatprep.subr.mxu0 0.0
    %189 = vmatpush1.msra.mxu0 0.0
    %190 = vmatprep.subr.mxu0 0.0
    %191 = vmatpush1.msra.mxu0 0.0
    %192 = vmatprep.subr.mxu0 0.0
    %193 = vmatpush1.msra.mxu0 0.0
    %194 = vmatprep.subr.mxu0 0.0
    %195 = vmatpush1.msra.mxu0 0.0
    %196 = vmatprep.subr.mxu0 0.0
    %197 = vmatpush1.msra.mxu0 %v88
    %198 = vmatprep.subr.mxu0 0.0
    %199 = vmatpush1.msra.mxu0 %v87
    %200 = vmatprep.subr.mxu0 0.0
    %201 = vmatpush1.msra.mxu0 %v86
    %202 = vmatprep.subr.mxu0 0.0
    %203 = vmatpush1.msra.mxu0 %v85
    %204 = vmatprep.subr.mxu0 0.0
    %205 = vmatpush2.msra.mxu0 0.0
    %206 = vmatprep.subr.mxu0 0.0
    %207 = vmatpush2.msra.mxu0 0.0
    %208 = vmatprep.subr.mxu0 0.0
    %209 = vmatpush2.msra.mxu0 0.0
    %210 = vmatprep.subr.mxu0 0.0
    %211 = vmatpush2.msra.mxu0 0.0
    %212 = vmatprep.subr.mxu0 0.0
    %213 = vmatpush2.msra.mxu0 0.0
    %214 = vmatprep.subr.mxu0 0.0
    %215 = vmatpush2.msra.mxu0 0.0
    %216 = vmatprep.subr.mxu0 0.0
    %217 = vmatpush2.msra.mxu0 0.0
    %218 = vmatprep.subr.mxu0 0.0
    %219 = vmatpush2.msra.mxu0 0.0
    %220 = vmatprep.subr.mxu0 0.0
    %221 = vmatpush2.msra.mxu0 0.0
    %222 = vmatprep.subr.mxu0 0.0
    %223 = vmatpush2.msra.mxu0 0.0
    %224 = vmatprep.subr.mxu0 0.0
    %225 = vmatpush2.msra.mxu0 0.0
    %226 = vmatprep.subr.mxu0 0.0
    %227 = vmatpush2.msra.mxu0 0.0
    %228 = vmatprep.subr.mxu0 0.0
    %229 = vmatpush2.msra.mxu0 0.0
    %230 = vmatprep.subr.mxu0 0.0
    %231 = vmatpush2.msra.mxu0 0.0
    %232 = vmatprep.subr.mxu0 0.0
    %233 = vmatpush2.msra.mxu0 0.0
    %234 = vmatprep.subr.mxu0 0.0
    %235 = vmatpush2.msra.mxu0 0.0
    %236 = vmatprep.mubr.f32.mxu0 0.0
    %237 = vmatmul.mubr.f32.gmra.mxu0 %v170
    %v238 = vpop.f32.mrf.mxu0
    %v239 = vadd.f32 %v163, %v238
    %v240 = vpop.f32.mrf.mxu0
    %241 = vdwg.mxu0
    %vm242 = vcmask 25600
    %243 = vst.msk [vmem:[#allocation5] sm:$0x3] %vm242, %v239
    %v244 = vld [vmem:[%s0] sm:$0x3]
    %v245 = vmul.f32 %v244, 0.1
    %v246 = vadd.f32 %v245, 1.0
    %248 = vset.pattern.permute.xlu0 0
    %249 = vperm.xlu0 %248, %v246
    %v250 = vpop.permute.xlu0 %249
    %252 = vst.msk [vmem:[#allocation3] sm:$0x3] %vm242, %v250
    // Predicated region
    $region34: #{tpu_custom_call.1} parent=1 // pred_check
      _
    $region35: #{tpu_custom_call.1} parent=1 // pred_check_branch
      %254 = sbr.rel (0) target = $region37
    $region36: #{tpu_custom_call.1} parent=1 // pred_region
      %s256 = ssub.s32 32, 32
      %257 = vsyncadd [#allocation4], %s256
      %s259 = sshll.u32 [#allocation3], 4
      %s260 = int_to_ptr.vmem [resolvable:$true] %s259
      %262 = dma.vmem_to_hbm [thread:$0]  %s260, 32, %s8, [#allocation4]
    $region37: #{tpu_custom_call.1} parent=1 // pred_fallthru
      _
    // Predicated region
    $region38: #{tpu_custom_call.1} parent=1 // pred_check
      _
    $region39: #{tpu_custom_call.1} parent=1 // pred_check_branch
      %264 = sbr.rel (0) target = $region41
    $region40: #{tpu_custom_call.1} parent=1 // pred_region
      %s266 = ssub.s32 32, 32
      %267 = vsyncadd [#allocation6], %s266
      %s269 = sshll.u32 [#allocation5], 4
      %s270 = int_to_ptr.vmem [resolvable:$true] %s269
      %272 = dma.vmem_to_hbm [thread:$0]  %s270, 32, %s9, [#allocation6]
    $region41: #{tpu_custom_call.1} parent=1 // pred_fallthru
      _
    // Predicated region
    $region42: #{tpu_custom_call.1} parent=1 // pred_check
      _
    $region43: #{tpu_custom_call.1} parent=1 // pred_check_branch
      %274 = sbr.rel (0) target = $region45
    $region44: #{tpu_custom_call.1} parent=1 // pred_region
      %275 = dma.done [#allocation4], 32
    $region45: #{tpu_custom_call.1} parent=1 // pred_fallthru
      _
    // Predicated region
    $region46: #{tpu_custom_call.1} parent=1 // pred_check
      _
    $region47: #{tpu_custom_call.1} parent=1 // pred_check_branch
      %277 = sbr.rel (0) target = $region49
    $region48: #{tpu_custom_call.1} parent=1 // pred_region
      %278 = dma.done [#allocation6], 32
    $region49: #{tpu_custom_call.1} parent=1 // pred_fallthru
      _
    %279 = vsyncpa [#allocation4], 1
    %280 = vsyncpa [#allocation6], 1

</llo_original>
